<compile_context>
chip_gen: v6e
topology: v6e:2x2x1
jax: 0.10.0
libtpu: 0.0.40
codegen_flags: <defaults>
</compile_context>

<pallas_src>
import jax
import jax.numpy as jnp
from jax.experimental import pallas as pl
from jax.experimental.pallas import tpu as pltpu


def _round_up(n, m):
    return ((n + m - 1) // m) * m


def _sublane_multiple(dtype):
    # Sub-32-bit dtypes pack along sublanes: 8 rows for f32, 16 for bf16, 32 for int8/fp8.
    return max(8, 32 // jnp.dtype(dtype).itemsize)


def _vmem_limit_bytes():
    # Generation-aware budget: ~75% of physical VMEM per TensorCore
    # (v5e/v6e: 128 MiB -> 96 MiB; v7x: 64 MiB -> 48 MiB). Conservative (v7x-sized)
    # fallback if the hardware query is unavailable.
    try:
        phys = int(pltpu.get_tpu_info().vmem_capacity_bytes)
    except Exception:
        phys = 64 * 1024 * 1024
    return int(phys * 0.75)


def _num_tensorcores():
    # v7x has 2 TensorCores per chip; v5e/v6e have 1. Default to 1 if unknown
    # (safe: no forced grid split, which would be pure per-step overhead on 1-TC parts).
    try:
        info = pltpu.get_tpu_info()
        for attr in ("num_cores", "core_count", "num_tensorcores"):
            v = getattr(info, attr, None)
            if v is not None:
                return max(1, int(v))
    except Exception:
        pass
    try:
        return max(1, int(getattr(jax.devices()[0], "num_cores", 1)))
    except Exception:
        return 1


def _choose_tiles(B, F, dtype, vmem_limit):
    itemsize = jnp.dtype(dtype).itemsize
    sub = _sublane_multiple(dtype)
    B_pad = _round_up(B, sub)

    # Absolute per-buffer cap: roofline fraction saturates around ~512-1024 rows
    # (~8 MiB f32 tiles); beyond that bigger tiles only burn VMEM headroom.
    tile_cap = min(8 * 1024 * 1024, max(512 * 1024, vmem_limit // 5))

    # ---- Feature (lane) tile: prefer the full width ---------------------------------
    if F * sub * itemsize <= tile_cap:
        tf = F  # full-dim block is legal even when F % 128 != 0
    else:
        # Very wide F: 128-multiple tf, Pallas clips the edge feature block.
        tf = (tile_cap // (sub * itemsize) // 128) * 128
        tf = int(max(128, min(2048, tf)))
        tf = min(tf, F)

    # ---- Row (sublane) tile: biggest sublane-aligned tm under the per-tile cap ------
    tm = max(sub, (tile_cap // (tf * itemsize) // sub) * sub)
    tm = min(tm, 1024)          # no roofline benefit beyond ~1k rows per tile
    tm = min(tm, B_pad)

    # ---- Megacore (v7x only): leading row-tile axis gets >= 2 (ideally even) steps --
    if _num_tensorcores() >= 2 and B * F * itemsize >= (1 << 20) and B_pad >= 2 * sub:
        n_row = pl.cdiv(B, tm)
        if n_row < 2:
            tm = max(sub, _round_up(pl.cdiv(B_pad, 2), sub))
        elif n_row % 2 == 1 and n_row <= 8:
            tm_even = max(sub, _round_up(pl.cdiv(B_pad, n_row + 1), sub))
            if pl.cdiv(B, tm_even) % 2 == 0:
                tm = tm_even

    # ---- Safety guard: 2x input + 2x output tiles + resident weight row must fit ----
    def live_bytes(tm_, tf_):
        return (4 * tm_ * tf_ + 2 * tf_) * itemsize

    while tm > sub and live_bytes(tm, tf) > int(vmem_limit * 0.85):
        tm = max(sub, (tm // 2 // sub) * sub)

    return tm, tf


def diag_linear_kernel(x_ref, w_ref, o_ref):
    # x_ref: (tm, tf) tile, w_ref: (1, tf) row chunk -> broadcast multiply on the VPU.
    # One vld + one vmul + one vst per vreg; DMA/HBM is the binding resource.
    o_ref[...] = (x_ref[...] * w_ref[...]).astype(o_ref.dtype)


def diag_linear(x, w, *, tm=None, tf=None, donate_input=False):
    """x: (B, F), w: (F,) -> (B, F) with out[b, f] = x[b, f] * w[f]."""
    B, F = x.shape
    assert w.shape == (F,), f"weight must be ({F},), got {w.shape}"

    # Explicit dtype handling: weight participates at the input's compute dtype,
    # output dtype == x.dtype (avoids silent mixed-precision downcast surprises).
    if w.dtype != x.dtype:
        w = w.astype(x.dtype)

    vmem_limit = _vmem_limit_bytes()
    auto_tm, auto_tf = _choose_tiles(B, F, x.dtype, vmem_limit)
    tm = auto_tm if tm is None else tm
    tf = auto_tf if tf is None else tf

    sub = _sublane_multiple(x.dtype)
    assert tm == B or tm % sub == 0, f"tm={tm} must be a multiple of {sub} (or == B)"
    assert tf == F or tf % 128 == 0, f"tf={tf} must be a multiple of 128 (or == F)"

    w2d = w.reshape(1, F)  # lane-dense weight row; resident across all row tiles

    # Row-tile axis first so megacore sharding sees the multi-step parallel axis.
    grid = (pl.cdiv(B, tm), pl.cdiv(F, tf))  # edge (partial) blocks clipped by Pallas

    extra = {}
    if donate_input:
        # Caller promises not to use x afterwards: reuse its HBM buffer as the output.
        # Same HBM traffic, half the activation footprint.
        extra["input_output_aliases"] = {0: 0}

    return pl.pallas_call(
        diag_linear_kernel,
        out_shape=jax.ShapeDtypeStruct((B, F), x.dtype),
        grid_spec=pltpu.PrefetchScalarGridSpec(
            num_scalar_prefetch=0,
            grid=grid,
            in_specs=[
                pl.BlockSpec((tm, tf), lambda i, j: (i, j)),  # x tile marches over (B, F)
                pl.BlockSpec((1, tf), lambda i, j: (0, j)),   # weight row chunk
            ],
            out_specs=pl.BlockSpec((tm, tf), lambda i, j: (i, j)),
        ),
        compiler_params=pltpu.CompilerParams(
            dimension_semantics=("parallel", "parallel"),
            vmem_limit_bytes=vmem_limit,
        ),
        **extra,
    )(x, w2d)


if __name__ == "__main__":
    key = jax.random.PRNGKey(0)
    kx, kw, kx2, kw2, kx3, kw3, kx4, kw4 = jax.random.split(key, 8)

    # Case 1: small, (8,128)-aligned f32 shapes (batch=8, in_features=128).
    B, F = 8, 128
    x = jax.random.normal(kx, (B, F), dtype=jnp.float32)
    # Module's reset_parameters() sets weight to zeros; use a non-trivial weight here
    # so the kernel's compute is actually exercised.
    w = jax.random.normal(kw, (F,), dtype=jnp.float32)
    out = jax.block_until_ready(diag_linear(x, w))
    ref = x @ jnp.diag(w).T  # exactly what F.linear(x, torch.diag(w)) computes
    assert jnp.allclose(out, ref, atol=1e-6, rtol=1e-6)

    # Case 2: batch not divisible by the row tile (tail block) + multi-step row axis.
    B2, F2 = 20, 384
    x2 = jax.random.normal(kx2, (B2, F2), dtype=jnp.float32)
    w2 = jax.random.normal(kw2, (F2,), dtype=jnp.float32)
    out2 = jax.block_until_ready(diag_linear(x2, w2, tm=8))
    assert jnp.allclose(out2, x2 * w2[None, :], atol=1e-6, rtol=1e-6)

    # Case 3: bf16 input exercises the dtype-aware sublane tile (multiple of 16 rows)
    # and the explicit weight cast (f32 weight -> bf16 compute/output dtype).
    B3, F3 = 32, 256
    x3 = jax.random.normal(kx3, (B3, F3), dtype=jnp.float32).astype(jnp.bfloat16)
    w3 = jax.random.normal(kw3, (F3,), dtype=jnp.float32)
    out3 = jax.block_until_ready(diag_linear(x3, w3))
    ref3 = x3.astype(jnp.float32) * w3.astype(jnp.bfloat16).astype(jnp.float32)[None, :]
    assert out3.dtype == jnp.bfloat16
    assert jnp.allclose(out3.astype(jnp.float32), ref3, atol=1e-2, rtol=1e-2)

    # Case 4: feature dim not a multiple of 128 -> full-width (tf = F) unaligned block.
    B4, F4 = 16, 200
    x4 = jax.random.normal(kx4, (B4, F4), dtype=jnp.float32)
    w4 = jax.random.normal(kw4, (F4,), dtype=jnp.float32)
    out4 = jax.block_until_ready(diag_linear(x4, w4))
    assert jnp.allclose(out4, x4 * w4[None, :], atol=1e-6, rtol=1e-6)

    # Case 5: the module's default (zero) weight -> all-zero output.
    out_zero = jax.block_until_ready(diag_linear(x, jnp.zeros((F,), jnp.float32)))
    assert jnp.all(out_zero == 0.0)

    print("KERNEL_OK")
</pallas_src>

<mosaic_0001>
module attributes {stable_mosaic.version = 11 : i64} {
  func.func @diag_linear_kernel(%arg0: i32, %arg1: i32, %arg2: memref<8x128xf32, #tpu.memory_space<vmem>>, %arg3: memref<1x128xf32, #tpu.memory_space<vmem>>, %arg4: memref<8x128xf32, #tpu.memory_space<vmem>>) attributes {dimension_semantics = [#tpu.dimension_semantics<parallel>, #tpu.dimension_semantics<parallel>], iteration_bounds = array<i64: 1, 1>, scalar_prefetch = 0 : i64, scratch_operands = 0 : i64, tpu.core_type = #tpu.core_type<tc>, window_params = [{transform_indices = @transform_0, window_bounds = array<i64: 8, 128>}, {transform_indices = @transform_1, window_bounds = array<i64: 1, 128>}, {transform_indices = @transform_2, window_bounds = array<i64: 8, 128>}]} {
    %c0 = arith.constant 0 : index
    %c0_0 = arith.constant 0 : index
    %0 = vector.load %arg2[%c0, %c0_0] : memref<8x128xf32, #tpu.memory_space<vmem>>, vector<8x128xf32>
    %c0_1 = arith.constant 0 : index
    %c0_2 = arith.constant 0 : index
    %1 = vector.load %arg3[%c0_1, %c0_2] : memref<1x128xf32, #tpu.memory_space<vmem>>, vector<1x128xf32>
    %2 = vector.broadcast %1 : vector<1x128xf32> to vector<8x128xf32>
    %3 = arith.mulf %0, %2 : vector<8x128xf32>
    %c0_3 = arith.constant 0 : index
    %c0_4 = arith.constant 0 : index
    %4 = vector.load %arg4[%c0_3, %c0_4] : memref<8x128xf32, #tpu.memory_space<vmem>>, vector<8x128xf32>
    tpu.vector_store %arg4[%c0_3, %c0_4], %3 {strides = array<i32>} : memref<8x128xf32, #tpu.memory_space<vmem>>, vector<8x128xf32>,
    return
  }
  func.func @transform_0(%arg0: i32, %arg1: i32) -> (i32, i32) {
    %c0_i32 = arith.constant 0 : i32
    return %arg0, %arg1 : i32, i32
  }
  func.func @transform_1(%arg0: i32, %arg1: i32) -> (i32, i32) {
    %c0_i32 = arith.constant 0 : i32
    %c0_i32_0 = arith.constant 0 : i32
    return %c0_i32, %arg1 : i32, i32
  }
  func.func @transform_2(%arg0: i32, %arg1: i32) -> (i32, i32) {
    %c0_i32 = arith.constant 0 : i32
    return %arg0, %arg1 : i32, i32
  }
}

</mosaic_0001>

<llo_original>
// kernel: tpu_custom_call.1
$region0: #{tpu_custom_call.1}
  #allocation0 [shape = 'u32[]', space=smem, size = 0x4, offset = 0x4, fixed_abs, tag = 'smem constant byte address 0x4 - core index']
  #allocation1 [shape = 'u32[144,128]{1,0:T(1,128)}', space=vmem, size = 0x12000, scoped, tag = 'internal scratch']
  %s0 = inlined_call_operand.hbm [shape: f32[8,128], index: 0, kind: input, shape index: {}]
  %s1 = inlined_call_operand.vmem [shape: f32[1,128], index: 1, kind: input, shape index: {}]
  %s2 = inlined_call_operand.hbm [shape: f32[8,128], index: 2, kind: output, shape index: {}]
  %s3 = sld [smem:[#allocation0]]
  $region22: #{tpu_custom_call.1} parent=0
    _
  %s5 = ssub.s32 1, %s3
  %s6 = scalar_select 0, %s5, %s3
  $region1: #{tpu_custom_call.1} parent=0
    #allocation2 [shape = 'u8[4096]{0}', space=vmem, size = 0x1000, scoped, tag = 'input window, operand 0, single buffered']
    #allocation3 [shape = 's32[1]{0}', space=sflag, size = 0x4, scoped, tag = 'scoped memory for tpu_custom_call.1']
    #allocation4 [shape = 's32[1]{0}', space=sflag, size = 0x4, scoped, tag = 'scoped memory for tpu_custom_call.1']
    #allocation5 [shape = 'u8[4096]{0}', space=vmem, size = 0x1000, scoped, tag = 'output window, operand 0, single buffered']
    %7 = vsyncpa [#allocation3], 0
    %8 = vsyncpa [#allocation4], 0
    // Predicated region
    $region2: #{tpu_custom_call.1} parent=1 // pred_check
      _
    $region3: #{tpu_custom_call.1} parent=1 // pred_check_branch
      %10 = sbr.rel (0) target = $region5
    $region4: #{tpu_custom_call.1} parent=1 // pred_region
      %s12 = ssub.s32 128, 128
      %13 = vsyncadd [#allocation3], %s12
      %s15 = sshll.u32 [#allocation2], 4
      %s16 = int_to_ptr.vmem [resolvable:$true] %s15
      %18 = dma.hbm_to_vmem [thread:$0]  %s0, 128, %s16, [#allocation3]
    $region5: #{tpu_custom_call.1} parent=1 // pred_fallthru
      _
    // Predicated region
    $region6: #{tpu_custom_call.1} parent=1 // pred_check
      _
    $region7: #{tpu_custom_call.1} parent=1 // pred_check_branch
      %20 = sbr.rel (0) target = $region9
    $region8: #{tpu_custom_call.1} parent=1 // pred_region
      _
    $region9: #{tpu_custom_call.1} parent=1 // pred_fallthru
      _
    // Predicated region
    $region10: #{tpu_custom_call.1} parent=1 // pred_check
      _
    $region11: #{tpu_custom_call.1} parent=1 // pred_check_branch
      %22 = sbr.rel (0) target = $region13
    $region12: #{tpu_custom_call.1} parent=1 // pred_region
      %23 = dma.done [#allocation3], 128
    $region13: #{tpu_custom_call.1} parent=1 // pred_fallthru
      _
    %v24 = vld [vmem:[#allocation2] sm:$0xff]
    %v25 = vld [vmem:[%s1] sm:$0x1]
    %v27 = vlaneseq
    %v28 = vshrl.u32 %v27, 7
    %v29 = vsub.s32 0, %v28
    %v30 = vrot.slane %v25, %v29
    %v32 = vmul.f32 %v24, %v30
    %33 = vst [vmem:[#allocation5] sm:$0xff] %v32
    // Predicated region
    $region14: #{tpu_custom_call.1} parent=1 // pred_check
      _
    $region15: #{tpu_custom_call.1} parent=1 // pred_check_branch
      %35 = sbr.rel (0) target = $region17
    $region16: #{tpu_custom_call.1} parent=1 // pred_region
      %s37 = ssub.s32 128, 128
      %38 = vsyncadd [#allocation4], %s37
      %s40 = sshll.u32 [#allocation5], 4
      %s41 = int_to_ptr.vmem [resolvable:$true] %s40
      %43 = dma.vmem_to_hbm [thread:$0]  %s41, 128, %s2, [#allocation4]
    $region17: #{tpu_custom_call.1} parent=1 // pred_fallthru
      _
    // Predicated region
    $region18: #{tpu_custom_call.1} parent=1 // pred_check
      _
    $region19: #{tpu_custom_call.1} parent=1 // pred_check_branch
      %45 = sbr.rel (0) target = $region21
    $region20: #{tpu_custom_call.1} parent=1 // pred_region
      %46 = dma.done [#allocation4], 128
    $region21: #{tpu_custom_call.1} parent=1 // pred_fallthru
      _
    %47 = vsyncpa [#allocation3], 1
    %48 = vsyncpa [#allocation4], 1

</llo_original>
